<compile_context>
chip_gen: v7x
topology: tpu7x:2x2x1
jax: 0.10.0
libtpu: 0.0.40
codegen_flags: <defaults>
</compile_context>

<pallas_src>
import functools

import jax
import jax.numpy as jnp
from jax.experimental import pallas as pl
from jax.experimental.pallas import tpu as pltpu


def _auto_compute_dtype():
    """bf16 channel-mix arithmetic on v6e/v7x (bf16 VALUs); f32 on v5e and older."""
    try:
        kind = jax.devices()[0].device_kind.lower()
    except Exception:
        return jnp.float32
    return jnp.bfloat16 if ("v6" in kind or "v7" in kind) else jnp.float32


def _make_kernel(C, C2, compute_dtype):
    w1_off = 0
    b1_off = C2 * C
    w2_off = b1_off + C2
    b2_off = w2_off + C * C2

    def kernel(params_ref, x_ref, o_ref):
        # params_ref: (P,) f32 in SMEM (scalar prefetch: w1 | b1 | w2 | b2, flattened)
        # x_ref/o_ref: (1, C, R, 128) VMEM blocks, R % 8 == 0 (fully (8,128)-dense)
        cd = compute_dtype
        xs = [x_ref[0, c].astype(cd) for c in range(C)]            # C x (R, 128)

        # ---- 1x1 conv #1 + ReLU: h[o] = max(0, sum_c w1[o,c]*x[c] + b1[o]) ----
        # Scalar-broadcast FMAs on the VPU; weights/biases are SMEM scalars.
        hs = []
        for o in range(C2):
            acc = xs[0] * params_ref[w1_off + o * C].astype(cd)
            for c in range(1, C):
                acc = acc + xs[c] * params_ref[w1_off + o * C + c].astype(cd)
            acc = acc + params_ref[b1_off + o].astype(cd)
            hs.append(jnp.maximum(acc, 0.0))

        # ---- 1x1 conv #2 + Sigmoid ----
        for o in range(C):
            acc = hs[0] * params_ref[w2_off + o * C2].astype(cd)
            for k in range(1, C2):
                acc = acc + hs[k] * params_ref[w2_off + o * C2 + k].astype(cd)
            acc = acc + params_ref[b2_off + o].astype(cd)
            y = acc.astype(jnp.float32)
            # sigmoid(y) == 0.5*(tanh(y/2)+1): one EUP op per element, no divide.
            o_ref[0, o] = (0.5 * (jnp.tanh(0.5 * y) + 1.0)).astype(o_ref.dtype)

    return kernel


def _pick_tile_rows(rows, n_images, row_bytes, max_tile_bytes):
    """Largest divisor of `rows` that is a multiple of 8, fits the per-block byte
    budget, and leaves >= 4 total grid steps when possible (2 TCs on v7x)."""
    cap = min(rows,
              max(8, max_tile_bytes // row_bytes),
              max(8, (n_images * rows) // 4))
    best = 8
    k = 1
    while 8 * k <= cap:
        if rows % (8 * k) == 0:
            best = 8 * k
        k += 1
    return best


@functools.partial(jax.jit, static_argnames=("compute_dtype", "max_tile_bytes"))
def spatial_attention(x_nchw, w1, b1, w2, b2, *, compute_dtype=None,
                      max_tile_bytes=1 << 20):
    """x_nchw: (N, C, H, W).  w1: (2C, C), b1: (2C,), w2: (C, 2C), b2: (C,).

    Weights keep the PyTorch Conv2d (Cout, Cin) orientation; the kernel contracts
    over channels directly in the NCHW-native (C, spatial) layout.
    """
    if compute_dtype is None:
        compute_dtype = _auto_compute_dtype()

    N, C, H, W = x_nchw.shape
    C2 = w1.shape[0]
    S = H * W

    # Pad the spatial axis up to a multiple of 8*128 and repack as (rows, 128) so the
    # trailing two block dims are fully (8,128)-dense.  Free when S is already a
    # multiple of 1024 (e.g. 224x224, 256x256, ...); tail pixels are sliced off below.
    S_pad = -(-S // 1024) * 1024
    x_flat = x_nchw.reshape(N, C, S)
    if S_pad != S:
        x_flat = jnp.pad(x_flat, ((0, 0), (0, 0), (0, S_pad - S)))
    rows = S_pad // 128
    x_packed = x_flat.reshape(N, C, rows, 128)

    # All weights/biases (2*C*C2 + C2 + C scalars) ride in SMEM via scalar prefetch.
    params = jnp.concatenate([
        w1.reshape(-1).astype(jnp.float32), b1.reshape(-1).astype(jnp.float32),
        w2.reshape(-1).astype(jnp.float32), b2.reshape(-1).astype(jnp.float32)])

    row_bytes = C * 128 * x_nchw.dtype.itemsize
    tile_rows = _pick_tile_rows(rows, N, row_bytes, max_tile_bytes)
    grid = (N, rows // tile_rows)      # both axes independent -> megacore/2-TC friendly

    # Advisory: HBM-bound elementwise channel mix + one transcendental per output elem.
    cost = pl.CostEstimate(
        flops=4 * N * S_pad * C * C2,
        transcendentals=N * S_pad * C,
        bytes_accessed=2 * N * C * S_pad * x_nchw.dtype.itemsize + params.size * 4,
    )

    kernel = _make_kernel(C, C2, compute_dtype)
    block = (1, C, tile_rows, 128)
    idx = lambda n, s, params_ref: (n, 0, s, 0)

    out_packed = pl.pallas_call(
        kernel,
        out_shape=jax.ShapeDtypeStruct((N, C, rows, 128), x_nchw.dtype),
        grid_spec=pltpu.PrefetchScalarGridSpec(
            num_scalar_prefetch=1,
            grid=grid,
            in_specs=[pl.BlockSpec(block, idx)],
            out_specs=pl.BlockSpec(block, idx),
        ),
        compiler_params=pltpu.CompilerParams(
            dimension_semantics=("parallel", "parallel")),
        cost_estimate=cost,
    )(params, x_packed)

    out_flat = out_packed.reshape(N, C, S_pad)
    if S_pad != S:
        out_flat = out_flat[:, :, :S]
    return out_flat.reshape(N, C, H, W)


def init_params(key, in_channels, dtype=jnp.float32):
    """Synthetic params matching Conv2d(Cin,2Cin,1) and Conv2d(2Cin,Cin,1).

    PyTorch 1x1 conv weights are (Cout, Cin, 1, 1) == (Cout, Cin); we keep that
    orientation so the kernel computes W @ X over the channel axis.
    """
    c2 = in_channels * 2
    k1, k2, k3, k4 = jax.random.split(key, 4)
    bound1 = 1.0 / (in_channels ** 0.5)
    bound2 = 1.0 / (c2 ** 0.5)
    w1 = jax.random.uniform(k1, (c2, in_channels), dtype, -bound1, bound1)
    b1 = jax.random.uniform(k2, (c2,), dtype, -bound1, bound1)
    w2 = jax.random.uniform(k3, (in_channels, c2), dtype, -bound2, bound2)
    b2 = jax.random.uniform(k4, (in_channels,), dtype, -bound2, bound2)
    return w1, b1, w2, b2


if __name__ == "__main__":
    key = jax.random.PRNGKey(0)
    kx, kp = jax.random.split(key)

    N, C, H, W = 2, 4, 16, 16
    x = jax.random.normal(kx, (N, C, H, W), jnp.float32)
    w1, b1, w2, b2 = init_params(kp, C)

    out = spatial_attention(x, w1, b1, w2, b2)
    out = jax.block_until_ready(out)

    # Reference in plain JAX (same math: per-pixel channel mix in NCHW).
    def ref(xin):
        xf = xin.reshape(N, C, H * W)
        h = jnp.maximum(jnp.einsum("oc,ncs->nos", w1, xf) + b1[None, :, None], 0.0)
        y = jax.nn.sigmoid(jnp.einsum("oc,ncs->nos", w2, h) + b2[None, :, None])
        return y.reshape(N, C, H, W)

    expected = ref(x)
    tol = 2e-2 if _auto_compute_dtype() == jnp.bfloat16 else 1e-4
    assert out.shape == (N, C, H, W)
    assert jnp.allclose(out, expected, atol=tol, rtol=tol), "mismatch vs reference"

    print("KERNEL_OK")
</pallas_src>

<mosaic_0001>
module attributes {stable_mosaic.version = 11 : i64} {
  func.func @kernel(%arg0: i32, %arg1: i32, %arg2: memref<76xf32, #tpu.memory_space<smem>>, %arg3: memref<1x4x8x128xf32, #tpu.memory_space<vmem>>, %arg4: memref<1x4x8x128xf32, #tpu.memory_space<vmem>>) attributes {dimension_semantics = [#tpu.dimension_semantics<parallel>, #tpu.dimension_semantics<parallel>], iteration_bounds = array<i64: 2, 1>, scalar_prefetch = 1 : i64, scratch_operands = 0 : i64, tpu.core_type = #tpu.core_type<tc>, window_params = [{transform_indices = @transform_0, window_bounds = array<i64: 1, 4, 8, 128>}, {transform_indices = @transform_1, window_bounds = array<i64: 1, 4, 8, 128>}]} {
    %c0 = arith.constant 0 : index
    %c0_0 = arith.constant 0 : index
    %c0_1 = arith.constant 0 : index
    %c0_2 = arith.constant 0 : index
    %0 = vector.load %arg3[%c0, %c0_0, %c0_1, %c0_2] : memref<1x4x8x128xf32, #tpu.memory_space<vmem>>, vector<1x1x8x128xf32>
    %1 = vector.shape_cast %0 : vector<1x1x8x128xf32> to vector<8x128xf32>
    %c0_3 = arith.constant 0 : index
    %c1 = arith.constant 1 : index
    %c0_4 = arith.constant 0 : index
    %c0_5 = arith.constant 0 : index
    %2 = vector.load %arg3[%c0_3, %c1, %c0_4, %c0_5] : memref<1x4x8x128xf32, #tpu.memory_space<vmem>>, vector<1x1x8x128xf32>
    %3 = vector.shape_cast %2 : vector<1x1x8x128xf32> to vector<8x128xf32>
    %c0_6 = arith.constant 0 : index
    %c2 = arith.constant 2 : index
    %c0_7 = arith.constant 0 : index
    %c0_8 = arith.constant 0 : index
    %4 = vector.load %arg3[%c0_6, %c2, %c0_7, %c0_8] : memref<1x4x8x128xf32, #tpu.memory_space<vmem>>, vector<1x1x8x128xf32>
    %5 = vector.shape_cast %4 : vector<1x1x8x128xf32> to vector<8x128xf32>
    %c0_9 = arith.constant 0 : index
    %c3 = arith.constant 3 : index
    %c0_10 = arith.constant 0 : index
    %c0_11 = arith.constant 0 : index
    %6 = vector.load %arg3[%c0_9, %c3, %c0_10, %c0_11] : memref<1x4x8x128xf32, #tpu.memory_space<vmem>>, vector<1x1x8x128xf32>
    %7 = vector.shape_cast %6 : vector<1x1x8x128xf32> to vector<8x128xf32>
    %c0_12 = arith.constant 0 : index
    %8 = memref.load %arg2[%c0_12] : memref<76xf32, #tpu.memory_space<smem>>
    %9 = vector.broadcast %8 : f32 to vector<8x128xf32>
    %10 = arith.mulf %1, %9 : vector<8x128xf32>
    %c1_13 = arith.constant 1 : index
    %11 = memref.load %arg2[%c1_13] : memref<76xf32, #tpu.memory_space<smem>>
    %12 = vector.broadcast %11 : f32 to vector<8x128xf32>
    %13 = arith.mulf %3, %12 : vector<8x128xf32>
    %14 = arith.addf %10, %13 : vector<8x128xf32>
    %c2_14 = arith.constant 2 : index
    %15 = memref.load %arg2[%c2_14] : memref<76xf32, #tpu.memory_space<smem>>
    %16 = vector.broadcast %15 : f32 to vector<8x128xf32>
    %17 = arith.mulf %5, %16 : vector<8x128xf32>
    %18 = arith.addf %14, %17 : vector<8x128xf32>
    %c3_15 = arith.constant 3 : index
    %19 = memref.load %arg2[%c3_15] : memref<76xf32, #tpu.memory_space<smem>>
    %20 = vector.broadcast %19 : f32 to vector<8x128xf32>
    %21 = arith.mulf %7, %20 : vector<8x128xf32>
    %22 = arith.addf %18, %21 : vector<8x128xf32>
    %c32 = arith.constant 32 : index
    %23 = memref.load %arg2[%c32] : memref<76xf32, #tpu.memory_space<smem>>
    %24 = vector.broadcast %23 : f32 to vector<8x128xf32>
    %25 = arith.addf %22, %24 : vector<8x128xf32>
    %cst = arith.constant 0.000000e+00 : f32
    %26 = vector.broadcast %cst : f32 to vector<8x128xf32>
    %27 = arith.maximumf %25, %26 : vector<8x128xf32>
    %c4 = arith.constant 4 : index
    %28 = memref.load %arg2[%c4] : memref<76xf32, #tpu.memory_space<smem>>
    %29 = vector.broadcast %28 : f32 to vector<8x128xf32>
    %30 = arith.mulf %1, %29 : vector<8x128xf32>
    %c5 = arith.constant 5 : index
    %31 = memref.load %arg2[%c5] : memref<76xf32, #tpu.memory_space<smem>>
    %32 = vector.broadcast %31 : f32 to vector<8x128xf32>
    %33 = arith.mulf %3, %32 : vector<8x128xf32>
    %34 = arith.addf %30, %33 : vector<8x128xf32>
    %c6 = arith.constant 6 : index
    %35 = memref.load %arg2[%c6] : memref<76xf32, #tpu.memory_space<smem>>
    %36 = vector.broadcast %35 : f32 to vector<8x128xf32>
    %37 = arith.mulf %5, %36 : vector<8x128xf32>
    %38 = arith.addf %34, %37 : vector<8x128xf32>
    %c7 = arith.constant 7 : index
    %39 = memref.load %arg2[%c7] : memref<76xf32, #tpu.memory_space<smem>>
    %40 = vector.broadcast %39 : f32 to vector<8x128xf32>
    %41 = arith.mulf %7, %40 : vector<8x128xf32>
    %42 = arith.addf %38, %41 : vector<8x128xf32>
    %c33 = arith.constant 33 : index
    %43 = memref.load %arg2[%c33] : memref<76xf32, #tpu.memory_space<smem>>
    %44 = vector.broadcast %43 : f32 to vector<8x128xf32>
    %45 = arith.addf %42, %44 : vector<8x128xf32>
    %cst_16 = arith.constant 0.000000e+00 : f32
    %46 = vector.broadcast %cst_16 : f32 to vector<8x128xf32>
    %47 = arith.maximumf %45, %46 : vector<8x128xf32>
    %c8 = arith.constant 8 : index
    %48 = memref.load %arg2[%c8] : memref<76xf32, #tpu.memory_space<smem>>
    %49 = vector.broadcast %48 : f32 to vector<8x128xf32>
    %50 = arith.mulf %1, %49 : vector<8x128xf32>
    %c9 = arith.constant 9 : index
    %51 = memref.load %arg2[%c9] : memref<76xf32, #tpu.memory_space<smem>>
    %52 = vector.broadcast %51 : f32 to vector<8x128xf32>
    %53 = arith.mulf %3, %52 : vector<8x128xf32>
    %54 = arith.addf %50, %53 : vector<8x128xf32>
    %c10 = arith.constant 10 : index
    %55 = memref.load %arg2[%c10] : memref<76xf32, #tpu.memory_space<smem>>
    %56 = vector.broadcast %55 : f32 to vector<8x128xf32>
    %57 = arith.mulf %5, %56 : vector<8x128xf32>
    %58 = arith.addf %54, %57 : vector<8x128xf32>
    %c11 = arith.constant 11 : index
    %59 = memref.load %arg2[%c11] : memref<76xf32, #tpu.memory_space<smem>>
    %60 = vector.broadcast %59 : f32 to vector<8x128xf32>
    %61 = arith.mulf %7, %60 : vector<8x128xf32>
    %62 = arith.addf %58, %61 : vector<8x128xf32>
    %c34 = arith.constant 34 : index
    %63 = memref.load %arg2[%c34] : memref<76xf32, #tpu.memory_space<smem>>
    %64 = vector.broadcast %63 : f32 to vector<8x128xf32>
    %65 = arith.addf %62, %64 : vector<8x128xf32>
    %cst_17 = arith.constant 0.000000e+00 : f32
    %66 = vector.broadcast %cst_17 : f32 to vector<8x128xf32>
    %67 = arith.maximumf %65, %66 : vector<8x128xf32>
    %c12 = arith.constant 12 : index
    %68 = memref.load %arg2[%c12] : memref<76xf32, #tpu.memory_space<smem>>
    %69 = vector.broadcast %68 : f32 to vector<8x128xf32>
    %70 = arith.mulf %1, %69 : vector<8x128xf32>
    %c13 = arith.constant 13 : index
    %71 = memref.load %arg2[%c13] : memref<76xf32, #tpu.memory_space<smem>>
    %72 = vector.broadcast %71 : f32 to vector<8x128xf32>
    %73 = arith.mulf %3, %72 : vector<8x128xf32>
    %74 = arith.addf %70, %73 : vector<8x128xf32>
    %c14 = arith.constant 14 : index
    %75 = memref.load %arg2[%c14] : memref<76xf32, #tpu.memory_space<smem>>
    %76 = vector.broadcast %75 : f32 to vector<8x128xf32>
    %77 = arith.mulf %5, %76 : vector<8x128xf32>
    %78 = arith.addf %74, %77 : vector<8x128xf32>
    %c15 = arith.constant 15 : index
    %79 = memref.load %arg2[%c15] : memref<76xf32, #tpu.memory_space<smem>>
    %80 = vector.broadcast %79 : f32 to vector<8x128xf32>
    %81 = arith.mulf %7, %80 : vector<8x128xf32>
    %82 = arith.addf %78, %81 : vector<8x128xf32>
    %c35 = arith.constant 35 : index
    %83 = memref.load %arg2[%c35] : memref<76xf32, #tpu.memory_space<smem>>
    %84 = vector.broadcast %83 : f32 to vector<8x128xf32>
    %85 = arith.addf %82, %84 : vector<8x128xf32>
    %cst_18 = arith.constant 0.000000e+00 : f32
    %86 = vector.broadcast %cst_18 : f32 to vector<8x128xf32>
    %87 = arith.maximumf %85, %86 : vector<8x128xf32>
    %c16 = arith.constant 16 : index
    %88 = memref.load %arg2[%c16] : memref<76xf32, #tpu.memory_space<smem>>
    %89 = vector.broadcast %88 : f32 to vector<8x128xf32>
    %90 = arith.mulf %1, %89 : vector<8x128xf32>
    %c17 = arith.constant 17 : index
    %91 = memref.load %arg2[%c17] : memref<76xf32, #tpu.memory_space<smem>>
    %92 = vector.broadcast %91 : f32 to vector<8x128xf32>
    %93 = arith.mulf %3, %92 : vector<8x128xf32>
    %94 = arith.addf %90, %93 : vector<8x128xf32>
    %c18 = arith.constant 18 : index
    %95 = memref.load %arg2[%c18] : memref<76xf32, #tpu.memory_space<smem>>
    %96 = vector.broadcast %95 : f32 to vector<8x128xf32>
    %97 = arith.mulf %5, %96 : vector<8x128xf32>
    %98 = arith.addf %94, %97 : vector<8x128xf32>
    %c19 = arith.constant 19 : index
    %99 = memref.load %arg2[%c19] : memref<76xf32, #tpu.memory_space<smem>>
    %100 = vector.broadcast %99 : f32 to vector<8x128xf32>
    %101 = arith.mulf %7, %100 : vector<8x128xf32>
    %102 = arith.addf %98, %101 : vector<8x128xf32>
    %c36 = arith.constant 36 : index
    %103 = memref.load %arg2[%c36] : memref<76xf32, #tpu.memory_space<smem>>
    %104 = vector.broadcast %103 : f32 to vector<8x128xf32>
    %105 = arith.addf %102, %104 : vector<8x128xf32>
    %cst_19 = arith.constant 0.000000e+00 : f32
    %106 = vector.broadcast %cst_19 : f32 to vector<8x128xf32>
    %107 = arith.maximumf %105, %106 : vector<8x128xf32>
    %c20 = arith.constant 20 : index
    %108 = memref.load %arg2[%c20] : memref<76xf32, #tpu.memory_space<smem>>
    %109 = vector.broadcast %108 : f32 to vector<8x128xf32>
    %110 = arith.mulf %1, %109 : vector<8x128xf32>
    %c21 = arith.constant 21 : index
    %111 = memref.load %arg2[%c21] : memref<76xf32, #tpu.memory_space<smem>>
    %112 = vector.broadcast %111 : f32 to vector<8x128xf32>
    %113 = arith.mulf %3, %112 : vector<8x128xf32>
    %114 = arith.addf %110, %113 : vector<8x128xf32>
    %c22 = arith.constant 22 : index
    %115 = memref.load %arg2[%c22] : memref<76xf32, #tpu.memory_space<smem>>
    %116 = vector.broadcast %115 : f32 to vector<8x128xf32>
    %117 = arith.mulf %5, %116 : vector<8x128xf32>
    %118 = arith.addf %114, %117 : vector<8x128xf32>
    %c23 = arith.constant 23 : index
    %119 = memref.load %arg2[%c23] : memref<76xf32, #tpu.memory_space<smem>>
    %120 = vector.broadcast %119 : f32 to vector<8x128xf32>
    %121 = arith.mulf %7, %120 : vector<8x128xf32>
    %122 = arith.addf %118, %121 : vector<8x128xf32>
    %c37 = arith.constant 37 : index
    %123 = memref.load %arg2[%c37] : memref<76xf32, #tpu.memory_space<smem>>
    %124 = vector.broadcast %123 : f32 to vector<8x128xf32>
    %125 = arith.addf %122, %124 : vector<8x128xf32>
    %cst_20 = arith.constant 0.000000e+00 : f32
    %126 = vector.broadcast %cst_20 : f32 to vector<8x128xf32>
    %127 = arith.maximumf %125, %126 : vector<8x128xf32>
    %c24 = arith.constant 24 : index
    %128 = memref.load %arg2[%c24] : memref<76xf32, #tpu.memory_space<smem>>
    %129 = vector.broadcast %128 : f32 to vector<8x128xf32>
    %130 = arith.mulf %1, %129 : vector<8x128xf32>
    %c25 = arith.constant 25 : index
    %131 = memref.load %arg2[%c25] : memref<76xf32, #tpu.memory_space<smem>>
    %132 = vector.broadcast %131 : f32 to vector<8x128xf32>
    %133 = arith.mulf %3, %132 : vector<8x128xf32>
    %134 = arith.addf %130, %133 : vector<8x128xf32>
    %c26 = arith.constant 26 : index
    %135 = memref.load %arg2[%c26] : memref<76xf32, #tpu.memory_space<smem>>
    %136 = vector.broadcast %135 : f32 to vector<8x128xf32>
    %137 = arith.mulf %5, %136 : vector<8x128xf32>
    %138 = arith.addf %134, %137 : vector<8x128xf32>
    %c27 = arith.constant 27 : index
    %139 = memref.load %arg2[%c27] : memref<76xf32, #tpu.memory_space<smem>>
    %140 = vector.broadcast %139 : f32 to vector<8x128xf32>
    %141 = arith.mulf %7, %140 : vector<8x128xf32>
    %142 = arith.addf %138, %141 : vector<8x128xf32>
    %c38 = arith.constant 38 : index
    %143 = memref.load %arg2[%c38] : memref<76xf32, #tpu.memory_space<smem>>
    %144 = vector.broadcast %143 : f32 to vector<8x128xf32>
    %145 = arith.addf %142, %144 : vector<8x128xf32>
    %cst_21 = arith.constant 0.000000e+00 : f32
    %146 = vector.broadcast %cst_21 : f32 to vector<8x128xf32>
    %147 = arith.maximumf %145, %146 : vector<8x128xf32>
    %c28 = arith.constant 28 : index
    %148 = memref.load %arg2[%c28] : memref<76xf32, #tpu.memory_space<smem>>
    %149 = vector.broadcast %148 : f32 to vector<8x128xf32>
    %150 = arith.mulf %1, %149 : vector<8x128xf32>
    %c29 = arith.constant 29 : index
    %151 = memref.load %arg2[%c29] : memref<76xf32, #tpu.memory_space<smem>>
    %152 = vector.broadcast %151 : f32 to vector<8x128xf32>
    %153 = arith.mulf %3, %152 : vector<8x128xf32>
    %154 = arith.addf %150, %153 : vector<8x128xf32>
    %c30 = arith.constant 30 : index
    %155 = memref.load %arg2[%c30] : memref<76xf32, #tpu.memory_space<smem>>
    %156 = vector.broadcast %155 : f32 to vector<8x128xf32>
    %157 = arith.mulf %5, %156 : vector<8x128xf32>
    %158 = arith.addf %154, %157 : vector<8x128xf32>
    %c31 = arith.constant 31 : index
    %159 = memref.load %arg2[%c31] : memref<76xf32, #tpu.memory_space<smem>>
    %160 = vector.broadcast %159 : f32 to vector<8x128xf32>
    %161 = arith.mulf %7, %160 : vector<8x128xf32>
    %162 = arith.addf %158, %161 : vector<8x128xf32>
    %c39 = arith.constant 39 : index
    %163 = memref.load %arg2[%c39] : memref<76xf32, #tpu.memory_space<smem>>
    %164 = vector.broadcast %163 : f32 to vector<8x128xf32>
    %165 = arith.addf %162, %164 : vector<8x128xf32>
    %cst_22 = arith.constant 0.000000e+00 : f32
    %166 = vector.broadcast %cst_22 : f32 to vector<8x128xf32>
    %167 = arith.maximumf %165, %166 : vector<8x128xf32>
    %c40 = arith.constant 40 : index
    %168 = memref.load %arg2[%c40] : memref<76xf32, #tpu.memory_space<smem>>
    %169 = vector.broadcast %168 : f32 to vector<8x128xf32>
    %170 = arith.mulf %27, %169 : vector<8x128xf32>
    %c41 = arith.constant 41 : index
    %171 = memref.load %arg2[%c41] : memref<76xf32, #tpu.memory_space<smem>>
    %172 = vector.broadcast %171 : f32 to vector<8x128xf32>
    %173 = arith.mulf %47, %172 : vector<8x128xf32>
    %174 = arith.addf %170, %173 : vector<8x128xf32>
    %c42 = arith.constant 42 : index
    %175 = memref.load %arg2[%c42] : memref<76xf32, #tpu.memory_space<smem>>
    %176 = vector.broadcast %175 : f32 to vector<8x128xf32>
    %177 = arith.mulf %67, %176 : vector<8x128xf32>
    %178 = arith.addf %174, %177 : vector<8x128xf32>
    %c43 = arith.constant 43 : index
    %179 = memref.load %arg2[%c43] : memref<76xf32, #tpu.memory_space<smem>>
    %180 = vector.broadcast %179 : f32 to vector<8x128xf32>
    %181 = arith.mulf %87, %180 : vector<8x128xf32>
    %182 = arith.addf %178, %181 : vector<8x128xf32>
    %c44 = arith.constant 44 : index
    %183 = memref.load %arg2[%c44] : memref<76xf32, #tpu.memory_space<smem>>
    %184 = vector.broadcast %183 : f32 to vector<8x128xf32>
    %185 = arith.mulf %107, %184 : vector<8x128xf32>
    %186 = arith.addf %182, %185 : vector<8x128xf32>
    %c45 = arith.constant 45 : index
    %187 = memref.load %arg2[%c45] : memref<76xf32, #tpu.memory_space<smem>>
    %188 = vector.broadcast %187 : f32 to vector<8x128xf32>
    %189 = arith.mulf %127, %188 : vector<8x128xf32>
    %190 = arith.addf %186, %189 : vector<8x128xf32>
    %c46 = arith.constant 46 : index
    %191 = memref.load %arg2[%c46] : memref<76xf32, #tpu.memory_space<smem>>
    %192 = vector.broadcast %191 : f32 to vector<8x128xf32>
    %193 = arith.mulf %147, %192 : vector<8x128xf32>
    %194 = arith.addf %190, %193 : vector<8x128xf32>
    %c47 = arith.constant 47 : index
    %195 = memref.load %arg2[%c47] : memref<76xf32, #tpu.memory_space<smem>>
    %196 = vector.broadcast %195 : f32 to vector<8x128xf32>
    %197 = arith.mulf %167, %196 : vector<8x128xf32>
    %198 = arith.addf %194, %197 : vector<8x128xf32>
    %c72 = arith.constant 72 : index
    %199 = memref.load %arg2[%c72] : memref<76xf32, #tpu.memory_space<smem>>
    %200 = vector.broadcast %199 : f32 to vector<8x128xf32>
    %201 = arith.addf %198, %200 : vector<8x128xf32>
    %cst_23 = arith.constant 5.000000e-01 : f32
    %202 = vector.broadcast %cst_23 : f32 to vector<8x128xf32>
    %203 = arith.mulf %202, %201 : vector<8x128xf32>
    %204 = math.tanh %203 : vector<8x128xf32>
    %cst_24 = arith.constant 1.000000e+00 : f32
    %205 = vector.broadcast %cst_24 : f32 to vector<8x128xf32>
    %206 = arith.addf %204, %205 : vector<8x128xf32>
    %cst_25 = arith.constant 5.000000e-01 : f32
    %207 = vector.broadcast %cst_25 : f32 to vector<8x128xf32>
    %208 = arith.mulf %207, %206 : vector<8x128xf32>
    %c0_26 = arith.constant 0 : index
    %c0_27 = arith.constant 0 : index
    %c0_28 = arith.constant 0 : index
    %c0_29 = arith.constant 0 : index
    %209 = vector.load %arg4[%c0_26, %c0_27, %c0_28, %c0_29] : memref<1x4x8x128xf32, #tpu.memory_space<vmem>>, vector<1x1x8x128xf32>
    %210 = vector.shape_cast %209 : vector<1x1x8x128xf32> to vector<8x128xf32>
    %211 = vector.shape_cast %208 : vector<8x128xf32> to vector<1x1x8x128xf32>
    tpu.vector_store %arg4[%c0_26, %c0_27, %c0_28, %c0_29], %211 {strides = array<i32>} : memref<1x4x8x128xf32, #tpu.memory_space<vmem>>, vector<1x1x8x128xf32>,
    %c48 = arith.constant 48 : index
    %212 = memref.load %arg2[%c48] : memref<76xf32, #tpu.memory_space<smem>>
    %213 = vector.broadcast %212 : f32 to vector<8x128xf32>
    %214 = arith.mulf %27, %213 : vector<8x128xf32>
    %c49 = arith.constant 49 : index
    %215 = memref.load %arg2[%c49] : memref<76xf32, #tpu.memory_space<smem>>
    %216 = vector.broadcast %215 : f32 to vector<8x128xf32>
    %217 = arith.mulf %47, %216 : vector<8x128xf32>
    %218 = arith.addf %214, %217 : vector<8x128xf32>
    %c50 = arith.constant 50 : index
    %219 = memref.load %arg2[%c50] : memref<76xf32, #tpu.memory_space<smem>>
    %220 = vector.broadcast %219 : f32 to vector<8x128xf32>
    %221 = arith.mulf %67, %220 : vector<8x128xf32>
    %222 = arith.addf %218, %221 : vector<8x128xf32>
    %c51 = arith.constant 51 : index
    %223 = memref.load %arg2[%c51] : memref<76xf32, #tpu.memory_space<smem>>
    %224 = vector.broadcast %223 : f32 to vector<8x128xf32>
    %225 = arith.mulf %87, %224 : vector<8x128xf32>
    %226 = arith.addf %222, %225 : vector<8x128xf32>
    %c52 = arith.constant 52 : index
    %227 = memref.load %arg2[%c52] : memref<76xf32, #tpu.memory_space<smem>>
    %228 = vector.broadcast %227 : f32 to vector<8x128xf32>
    %229 = arith.mulf %107, %228 : vector<8x128xf32>
    %230 = arith.addf %226, %229 : vector<8x128xf32>
    %c53 = arith.constant 53 : index
    %231 = memref.load %arg2[%c53] : memref<76xf32, #tpu.memory_space<smem>>
    %232 = vector.broadcast %231 : f32 to vector<8x128xf32>
    %233 = arith.mulf %127, %232 : vector<8x128xf32>
    %234 = arith.addf %230, %233 : vector<8x128xf32>
    %c54 = arith.constant 54 : index
    %235 = memref.load %arg2[%c54] : memref<76xf32, #tpu.memory_space<smem>>
    %236 = vector.broadcast %235 : f32 to vector<8x128xf32>
    %237 = arith.mulf %147, %236 : vector<8x128xf32>
    %238 = arith.addf %234, %237 : vector<8x128xf32>
    %c55 = arith.constant 55 : index
    %239 = memref.load %arg2[%c55] : memref<76xf32, #tpu.memory_space<smem>>
    %240 = vector.broadcast %239 : f32 to vector<8x128xf32>
    %241 = arith.mulf %167, %240 : vector<8x128xf32>
    %242 = arith.addf %238, %241 : vector<8x128xf32>
    %c73 = arith.constant 73 : index
    %243 = memref.load %arg2[%c73] : memref<76xf32, #tpu.memory_space<smem>>
    %244 = vector.broadcast %243 : f32 to vector<8x128xf32>
    %245 = arith.addf %242, %244 : vector<8x128xf32>
    %cst_30 = arith.constant 5.000000e-01 : f32
    %246 = vector.broadcast %cst_30 : f32 to vector<8x128xf32>
    %247 = arith.mulf %246, %245 : vector<8x128xf32>
    %248 = math.tanh %247 : vector<8x128xf32>
    %cst_31 = arith.constant 1.000000e+00 : f32
    %249 = vector.broadcast %cst_31 : f32 to vector<8x128xf32>
    %250 = arith.addf %248, %249 : vector<8x128xf32>
    %cst_32 = arith.constant 5.000000e-01 : f32
    %251 = vector.broadcast %cst_32 : f32 to vector<8x128xf32>
    %252 = arith.mulf %251, %250 : vector<8x128xf32>
    %c0_33 = arith.constant 0 : index
    %c1_34 = arith.constant 1 : index
    %c0_35 = arith.constant 0 : index
    %c0_36 = arith.constant 0 : index
    %253 = vector.load %arg4[%c0_33, %c1_34, %c0_35, %c0_36] : memref<1x4x8x128xf32, #tpu.memory_space<vmem>>, vector<1x1x8x128xf32>
    %254 = vector.shape_cast %253 : vector<1x1x8x128xf32> to vector<8x128xf32>
    %255 = vector.shape_cast %252 : vector<8x128xf32> to vector<1x1x8x128xf32>
    tpu.vector_store %arg4[%c0_33, %c1_34, %c0_35, %c0_36], %255 {strides = array<i32>} : memref<1x4x8x128xf32, #tpu.memory_space<vmem>>, vector<1x1x8x128xf32>,
    %c56 = arith.constant 56 : index
    %256 = memref.load %arg2[%c56] : memref<76xf32, #tpu.memory_space<smem>>
    %257 = vector.broadcast %256 : f32 to vector<8x128xf32>
    %258 = arith.mulf %27, %257 : vector<8x128xf32>
    %c57 = arith.constant 57 : index
    %259 = memref.load %arg2[%c57] : memref<76xf32, #tpu.memory_space<smem>>
    %260 = vector.broadcast %259 : f32 to vector<8x128xf32>
    %261 = arith.mulf %47, %260 : vector<8x128xf32>
    %262 = arith.addf %258, %261 : vector<8x128xf32>
    %c58 = arith.constant 58 : index
    %263 = memref.load %arg2[%c58] : memref<76xf32, #tpu.memory_space<smem>>
    %264 = vector.broadcast %263 : f32 to vector<8x128xf32>
    %265 = arith.mulf %67, %264 : vector<8x128xf32>
    %266 = arith.addf %262, %265 : vector<8x128xf32>
    %c59 = arith.constant 59 : index
    %267 = memref.load %arg2[%c59] : memref<76xf32, #tpu.memory_space<smem>>
    %268 = vector.broadcast %267 : f32 to vector<8x128xf32>
    %269 = arith.mulf %87, %268 : vector<8x128xf32>
    %270 = arith.addf %266, %269 : vector<8x128xf32>
    %c60 = arith.constant 60 : index
    %271 = memref.load %arg2[%c60] : memref<76xf32, #tpu.memory_space<smem>>
    %272 = vector.broadcast %271 : f32 to vector<8x128xf32>
    %273 = arith.mulf %107, %272 : vector<8x128xf32>
    %274 = arith.addf %270, %273 : vector<8x128xf32>
    %c61 = arith.constant 61 : index
    %275 = memref.load %arg2[%c61] : memref<76xf32, #tpu.memory_space<smem>>
    %276 = vector.broadcast %275 : f32 to vector<8x128xf32>
    %277 = arith.mulf %127, %276 : vector<8x128xf32>
    %278 = arith.addf %274, %277 : vector<8x128xf32>
    %c62 = arith.constant 62 : index
    %279 = memref.load %arg2[%c62] : memref<76xf32, #tpu.memory_space<smem>>
    %280 = vector.broadcast %279 : f32 to vector<8x128xf32>
    %281 = arith.mulf %147, %280 : vector<8x128xf32>
    %282 = arith.addf %278, %281 : vector<8x128xf32>
    %c63 = arith.constant 63 : index
    %283 = memref.load %arg2[%c63] : memref<76xf32, #tpu.memory_space<smem>>
    %284 = vector.broadcast %283 : f32 to vector<8x128xf32>
    %285 = arith.mulf %167, %284 : vector<8x128xf32>
    %286 = arith.addf %282, %285 : vector<8x128xf32>
    %c74 = arith.constant 74 : index
    %287 = memref.load %arg2[%c74] : memref<76xf32, #tpu.memory_space<smem>>
    %288 = vector.broadcast %287 : f32 to vector<8x128xf32>
    %289 = arith.addf %286, %288 : vector<8x128xf32>
    %cst_37 = arith.constant 5.000000e-01 : f32
    %290 = vector.broadcast %cst_37 : f32 to vector<8x128xf32>
    %291 = arith.mulf %290, %289 : vector<8x128xf32>
    %292 = math.tanh %291 : vector<8x128xf32>
    %cst_38 = arith.constant 1.000000e+00 : f32
    %293 = vector.broadcast %cst_38 : f32 to vector<8x128xf32>
    %294 = arith.addf %292, %293 : vector<8x128xf32>
    %cst_39 = arith.constant 5.000000e-01 : f32
    %295 = vector.broadcast %cst_39 : f32 to vector<8x128xf32>
    %296 = arith.mulf %295, %294 : vector<8x128xf32>
    %c0_40 = arith.constant 0 : index
    %c2_41 = arith.constant 2 : index
    %c0_42 = arith.constant 0 : index
    %c0_43 = arith.constant 0 : index
    %297 = vector.load %arg4[%c0_40, %c2_41, %c0_42, %c0_43] : memref<1x4x8x128xf32, #tpu.memory_space<vmem>>, vector<1x1x8x128xf32>
    %298 = vector.shape_cast %297 : vector<1x1x8x128xf32> to vector<8x128xf32>
    %299 = vector.shape_cast %296 : vector<8x128xf32> to vector<1x1x8x128xf32>
    tpu.vector_store %arg4[%c0_40, %c2_41, %c0_42, %c0_43], %299 {strides = array<i32>} : memref<1x4x8x128xf32, #tpu.memory_space<vmem>>, vector<1x1x8x128xf32>,
    %c64 = arith.constant 64 : index
    %300 = memref.load %arg2[%c64] : memref<76xf32, #tpu.memory_space<smem>>
    %301 = vector.broadcast %300 : f32 to vector<8x128xf32>
    %302 = arith.mulf %27, %301 : vector<8x128xf32>
    %c65 = arith.constant 65 : index
    %303 = memref.load %arg2[%c65] : memref<76xf32, #tpu.memory_space<smem>>
    %304 = vector.broadcast %303 : f32 to vector<8x128xf32>
    %305 = arith.mulf %47, %304 : vector<8x128xf32>
    %306 = arith.addf %302, %305 : vector<8x128xf32>
    %c66 = arith.constant 66 : index
    %307 = memref.load %arg2[%c66] : memref<76xf32, #tpu.memory_space<smem>>
    %308 = vector.broadcast %307 : f32 to vector<8x128xf32>
    %309 = arith.mulf %67, %308 : vector<8x128xf32>
    %310 = arith.addf %306, %309 : vector<8x128xf32>
    %c67 = arith.constant 67 : index
    %311 = memref.load %arg2[%c67] : memref<76xf32, #tpu.memory_space<smem>>
    %312 = vector.broadcast %311 : f32 to vector<8x128xf32>
    %313 = arith.mulf %87, %312 : vector<8x128xf32>
    %314 = arith.addf %310, %313 : vector<8x128xf32>
    %c68 = arith.constant 68 : index
    %315 = memref.load %arg2[%c68] : memref<76xf32, #tpu.memory_space<smem>>
    %316 = vector.broadcast %315 : f32 to vector<8x128xf32>
    %317 = arith.mulf %107, %316 : vector<8x128xf32>
    %318 = arith.addf %314, %317 : vector<8x128xf32>
    %c69 = arith.constant 69 : index
    %319 = memref.load %arg2[%c69] : memref<76xf32, #tpu.memory_space<smem>>
    %320 = vector.broadcast %319 : f32 to vector<8x128xf32>
    %321 = arith.mulf %127, %320 : vector<8x128xf32>
    %322 = arith.addf %318, %321 : vector<8x128xf32>
    %c70 = arith.constant 70 : index
    %323 = memref.load %arg2[%c70] : memref<76xf32, #tpu.memory_space<smem>>
    %324 = vector.broadcast %323 : f32 to vector<8x128xf32>
    %325 = arith.mulf %147, %324 : vector<8x128xf32>
    %326 = arith.addf %322, %325 : vector<8x128xf32>
    %c71 = arith.constant 71 : index
    %327 = memref.load %arg2[%c71] : memref<76xf32, #tpu.memory_space<smem>>
    %328 = vector.broadcast %327 : f32 to vector<8x128xf32>
    %329 = arith.mulf %167, %328 : vector<8x128xf32>
    %330 = arith.addf %326, %329 : vector<8x128xf32>
    %c75 = arith.constant 75 : index
    %331 = memref.load %arg2[%c75] : memref<76xf32, #tpu.memory_space<smem>>
    %332 = vector.broadcast %331 : f32 to vector<8x128xf32>
    %333 = arith.addf %330, %332 : vector<8x128xf32>
    %cst_44 = arith.constant 5.000000e-01 : f32
    %334 = vector.broadcast %cst_44 : f32 to vector<8x128xf32>
    %335 = arith.mulf %334, %333 : vector<8x128xf32>
    %336 = math.tanh %335 : vector<8x128xf32>
    %cst_45 = arith.constant 1.000000e+00 : f32
    %337 = vector.broadcast %cst_45 : f32 to vector<8x128xf32>
    %338 = arith.addf %336, %337 : vector<8x128xf32>
    %cst_46 = arith.constant 5.000000e-01 : f32
    %339 = vector.broadcast %cst_46 : f32 to vector<8x128xf32>
    %340 = arith.mulf %339, %338 : vector<8x128xf32>
    %c0_47 = arith.constant 0 : index
    %c3_48 = arith.constant 3 : index
    %c0_49 = arith.constant 0 : index
    %c0_50 = arith.constant 0 : index
    %341 = vector.load %arg4[%c0_47, %c3_48, %c0_49, %c0_50] : memref<1x4x8x128xf32, #tpu.memory_space<vmem>>, vector<1x1x8x128xf32>
    %342 = vector.shape_cast %341 : vector<1x1x8x128xf32> to vector<8x128xf32>
    %343 = vector.shape_cast %340 : vector<8x128xf32> to vector<1x1x8x128xf32>
    tpu.vector_store %arg4[%c0_47, %c3_48, %c0_49, %c0_50], %343 {strides = array<i32>} : memref<1x4x8x128xf32, #tpu.memory_space<vmem>>, vector<1x1x8x128xf32>,
    return
  }
  func.func @transform_0(%arg0: i32, %arg1: i32, %arg2: memref<76xf32, #tpu.memory_space<smem>>) -> (i32, i32, i32, i32) {
    %c0_i32 = arith.constant 0 : i32
    %c0_i32_0 = arith.constant 0 : i32
    %c0_i32_1 = arith.constant 0 : i32
    return %arg0, %c0_i32, %arg1, %c0_i32_0 : i32, i32, i32, i32
  }
  func.func @transform_1(%arg0: i32, %arg1: i32, %arg2: memref<76xf32, #tpu.memory_space<smem>>) -> (i32, i32, i32, i32) {
    %c0_i32 = arith.constant 0 : i32
    %c0_i32_0 = arith.constant 0 : i32
    %c0_i32_1 = arith.constant 0 : i32
    return %arg0, %c0_i32, %arg1, %c0_i32_0 : i32, i32, i32, i32
  }
}

</mosaic_0001>

<llo_original>
// kernel: spatial_attention.1
$region0: #{spatial_attention.1}
  #allocation0 [shape = 'u32[]', space=smem, size = 0x4, offset = 0x4, fixed_abs, tag = 'smem constant byte address 0x4 - core index']
  #allocation1 [shape = 'u32[144,128]{1,0:T(1,128)}', space=vmem, size = 0x12000, scoped, tag = 'internal scratch']
  #allocation2 [shape = 's32[1]{0}', space=sflag, size = 0x4, scoped, tag = 'scoped memory for spatial_attention.1']
  #allocation3 [shape = 'u8[512]{0}', space=smem, size = 0x200, scoped, tag = 'prefetched SMEM operand 0']
  %s0 = inlined_call_operand.vmem [shape: f32[76], index: 0, kind: input, shape index: {}]
  %s1 = inlined_call_operand.vmem [shape: f32[2,4,8,128], index: 1, kind: input, shape index: {}]
  %s2 = inlined_call_operand.vmem [shape: f32[2,4,8,128], index: 2, kind: output, shape index: {}]
  %s3 = sld [smem:[#allocation0]]
  $region37: #{spatial_attention.1} parent=0
    _
  %s5 = ssub.s32 1, %s3
  %s6 = scalar_select 0, %s5, %s3
  %s7 = sshll.u32 %s0, 4
  %s8 = int_to_ptr.vmem [resolvable:$true] %s7
  %10 = dma.vmem_to_smem %s8, 16, [#allocation3], [#allocation2]
  %11 = dma.done [#allocation2], 16
  %12 = sfence
  loop: start=0, step=1, limit=4
  $region2: #{spatial_attention.1} parent=0 // loop_pre_header
    _
  $region3: #{spatial_attention.1} parent=0 // loop_header
    %s14 = sphi 0, %s18
    %p15 = scmp.ge.s32.totalorder %s14, 4
    %s21 = sphi 0, %s33
    %s22 = sphi 0, %s29
    %s23 = sphi 0, %s21
    %s24 = sphi 0, %s22
    %s25 = sphi 0, %s23
    %s26 = sphi 0, %s24
    %s38 = sphi 0, %s40
    %s41 = sphi 0, %s38
    %s42 = sphi 0, %s41
    %s58 = sphi 0, %s42
    %s66 = sphi 0, %s68
    %s69 = sphi 0, %s66
    %s70 = sphi 0, %s69
    %s86 = sphi 0, %s70
  $region4: #{spatial_attention.1} parent=0 // loop_header_branch
    %17 = sbr.rel (%p15) target = $region8
  $region5: #{spatial_attention.1} parent=0 // loop_body
    %s19 = ssub.s32 %s14, 1
    %s20 = ssub.s32 %s14, 2
    %s27 = sadd.s32 1, %s22
    %p28 = scmp.ge.s32.totalorder %s27, 1
    %s29 = scalar_select %p28, 0, %s27
    %s30 = sadd.s32 1, %s21
    %s31 = scalar_select %p28, %s30, %s21
    %p32 = scmp.ge.s32.totalorder %s31, 2
    %s33 = scalar_select %p32, 0, %s31
    %s34 = ssub.s32 %s21, %s33
    %s35 = ssub.s32 %s22, %s29
    %s36 = sor.u32 %s34, %s35
    %p37 = scmp.eq.s32.totalorder %s36, 0
    %s39 = sadd.s32 %s38, 1
    %s40 = scalar_select %p37, %s38, %s39
    %p43 = pneg %p37
    %p44 = scmp.eq.s32.totalorder %s14, 1
    %p45 = por %p43, %p44
    %p46 = scmp.ne.s32.totalorder %s38, %s41
    %p47 = scmp.eq.s32.totalorder %s14, 0
    %p48 = por %p46, %p47
    %p49 = scmp.ne.s32.totalorder %s38, %s41
    %p50 = scmp.eq.s32.totalorder %s19, 1
    %p51 = por %p49, %p50
    %p52 = scmp.ne.s32.totalorder %s41, %s42
    %p53 = scmp.eq.s32.totalorder %s19, 0
    %p54 = por %p52, %p53
    %p55 = scmp.ne.s32.totalorder %s41, %s42
    %p56 = scmp.eq.s32.totalorder %s20, 1
    %p57 = por %p55, %p56
    %p59 = scmp.ne.s32.totalorder %s42, %s58
    %p60 = scmp.eq.s32.totalorder %s20, 0
    %p61 = por %p59, %p60
    %s62 = ssub.s32 %s21, %s33
    %s63 = ssub.s32 %s22, %s29
    %s64 = sor.u32 %s62, %s63
    %p65 = scmp.eq.s32.totalorder %s64, 0
    %s67 = sadd.s32 %s66, 1
    %s68 = scalar_select %p65, %s66, %s67
    %p71 = pneg %p65
    %p72 = scmp.eq.s32.totalorder %s14, 1
    %p73 = por %p71, %p72
    %p74 = scmp.ne.s32.totalorder %s66, %s69
    %p75 = scmp.eq.s32.totalorder %s14, 0
    %p76 = por %p74, %p75
    %p77 = scmp.ne.s32.totalorder %s66, %s69
    %p78 = scmp.eq.s32.totalorder %s19, 1
    %p79 = por %p77, %p78
    %p80 = scmp.ne.s32.totalorder %s69, %s70
    %p81 = scmp.eq.s32.totalorder %s19, 0
    %p82 = por %p80, %p81
    %p83 = scmp.ne.s32.totalorder %s69, %s70
    %p84 = scmp.eq.s32.totalorder %s20, 1
    %p85 = por %p83, %p84
    %p87 = scmp.ne.s32.totalorder %s70, %s86
    %p88 = scmp.eq.s32.totalorder %s20, 0
    %p89 = por %p87, %p88
    %p90 = scmp.le.s32.totalorder 1, %s14
    %p91 = scmp.lt.s32.totalorder %s14, 3
    %p92 = pnand %p90, %p91
    %p93 = pneg %p92
    // Predicated region
    $region9: #{spatial_attention.1} parent=5 // pred_check
      _
    $region10: #{spatial_attention.1} parent=5 // pred_check_branch
      %95 = sbr.rel (%p92) target = $region12
    $region11: #{spatial_attention.1} parent=5 // pred_region
      %s96 = ssub.s32 %s14, 1
    $region12: #{spatial_attention.1} parent=5 // pred_fallthru
      _
    %p97 = scmp.lt.s32.totalorder %s14, 2
    // Predicated region
    $region13: #{spatial_attention.1} parent=5 // pred_check
      %p98 = pneg %p97
    $region14: #{spatial_attention.1} parent=5 // pred_check_branch
      %100 = sbr.rel (%p98) target = $region16
    $region15: #{spatial_attention.1} parent=5 // pred_region
      // Predicated region
      $region17: #{spatial_attention.1} parent=15 // pred_check
        %p101 = pneg %p48
      $region18: #{spatial_attention.1} parent=15 // pred_check_branch
        %103 = sbr.rel (%p101) target = $region20
      $region19: #{spatial_attention.1} parent=15 // pred_region
        %p104 = scmp.lt.s32.totalorder %s21, 1
        %s105 = scalar_select %p104, %s21, 1
        %p106 = scmp.lt.s32.totalorder %s22, 0
        %s107 = scalar_select %p106, %s22, 0
        %s108 = smul.addr %s105, 4
        %s109 = sadd.s32 %s107, %s108
        %s110 = smul.addr %s109, 8
        %s111 = scalar_lea.vmem %s1, %s110
      $region20: #{spatial_attention.1} parent=15 // pred_fallthru
        _
    $region16: #{spatial_attention.1} parent=5 // pred_fallthru
      _
    %p112 = scmp.le.s32.totalorder 1, %s14
    %p113 = scmp.lt.s32.totalorder %s14, 3
    %p114 = pnand %p112, %p113
    %p115 = pneg %p114
    // Predicated region
    $region21: #{spatial_attention.1} parent=5 // pred_check
      _
    $region22: #{spatial_attention.1} parent=5 // pred_check_branch
      %117 = sbr.rel (%p114) target = $region24
    $region23: #{spatial_attention.1} parent=5 // pred_region
      %s118 = ssub.s32 %s14, 1
      %p119 = scmp.lt.s32.totalorder %s23, 1
      %s120 = scalar_select %p119, %s23, 1
      %p121 = scmp.lt.s32.totalorder %s24, 0
      %s122 = scalar_select %p121, %s24, 0
      %s123 = smul.addr %s120, 4
      %s124 = sadd.s32 %s122, %s123
      %s125 = smul.addr %s124, 8
      %s126 = scalar_lea.vmem %s1, %s125
      %p127 = pneg %p54
      %p128 = pneg %p51
      %p129 = pneg %p82
      %p130 = pneg %p79
      %p131 = scmp.lt.s32.totalorder %s23, 1
      %s132 = scalar_select %p131, %s23, 1
      %p133 = scmp.lt.s32.totalorder %s24, 0
      %s134 = scalar_select %p133, %s24, 0
      %s135 = smul.addr %s132, 4
      %s136 = sadd.s32 %s134, %s135
      %s137 = smul.addr %s136, 8
      %s138 = scalar_lea.vmem %s2, %s137
      %p139 = scmp.lt.s32.totalorder %s23, 1
      %s140 = scalar_select %p139, %s23, 1
      %p141 = scmp.lt.s32.totalorder %s24, 0
      %s142 = scalar_select %p141, %s24, 0
      %s143 = smul.addr %s140, 4
      %s144 = sadd.s32 %s142, %s143
      %s145 = smul.addr %s144, 8
      %s146 = scalar_lea.vmem %s1, %s145
      %p147 = scmp.lt.s32.totalorder %s23, 1
      %s148 = scalar_select %p147, %s23, 1
      %p149 = scmp.lt.s32.totalorder %s24, 0
      %s150 = scalar_select %p149, %s24, 0
      %s151 = smul.addr %s148, 4
      %s152 = sadd.s32 %s150, %s151
      %s153 = smul.addr %s152, 8
      %s154 = scalar_lea.vmem %s2, %s153
      %v155 = vld [vmem:[%s146] sm:$0xff]
      %s156 = scalar_lea.vmem %s146, 8
      %v157 = vld [vmem:[%s156] sm:$0xff]
      %s158 = scalar_lea.vmem %s146, 16
      %v159 = vld [vmem:[%s158] sm:$0xff]
      %s160 = scalar_lea.vmem %s146, 24
      %v161 = vld [vmem:[%s160] sm:$0xff]
      %s162 = sld [smem:[#allocation3]]
      %v163 = vstv %s162
      %v164 = vmul.f32 %v155, %v163
      %s165 = sld [smem:[#allocation3 + $0x1]]
      %v166 = vstv %s165
      %v167 = vmul.f32 %v157, %v166
      %v168 = vadd.f32 %v164, %v167
      %s169 = sld [smem:[#allocation3 + $0x2]]
      %v170 = vstv %s169
      %v171 = vmul.f32 %v159, %v170
      %v172 = vadd.f32 %v168, %v171
      %s173 = sld [smem:[#allocation3 + $0x3]]
      %v174 = vstv %s173
      %v175 = vmul.f32 %v161, %v174
      %v176 = vadd.f32 %v172, %v175
      %s177 = sld [smem:[#allocation3 + $0x20]]
      %v178 = vstv %s177
      %v179 = vadd.f32 %v176, %v178
      %v180 = vmax.f32 %v179, 0.0
      %s181 = sld [smem:[#allocation3 + $0x4]]
      %v182 = vstv %s181
      %v183 = vmul.f32 %v155, %v182
      %s184 = sld [smem:[#allocation3 + $0x5]]
      %v185 = vstv %s184
      %v186 = vmul.f32 %v157, %v185
      %v187 = vadd.f32 %v183, %v186
      %s188 = sld [smem:[#allocation3 + $0x6]]
      %v189 = vstv %s188
      %v190 = vmul.f32 %v159, %v189
      %v191 = vadd.f32 %v187, %v190
      %s192 = sld [smem:[#allocation3 + $0x7]]
      %v193 = vstv %s192
      %v194 = vmul.f32 %v161, %v193
      %v195 = vadd.f32 %v191, %v194
      %s196 = sld [smem:[#allocation3 + $0x21]]
      %v197 = vstv %s196
      %v198 = vadd.f32 %v195, %v197
      %v199 = vmax.f32 %v198, 0.0
      %s200 = sld [smem:[#allocation3 + $0x8]]
      %v201 = vstv %s200
      %v202 = vmul.f32 %v155, %v201
      %s203 = sld [smem:[#allocation3 + $0x9]]
      %v204 = vstv %s203
      %v205 = vmul.f32 %v157, %v204
      %v206 = vadd.f32 %v202, %v205
      %s207 = sld [smem:[#allocation3 + $0xa]]
      %v208 = vstv %s207
      %v209 = vmul.f32 %v159, %v208
      %v210 = vadd.f32 %v206, %v209
      %s211 = sld [smem:[#allocation3 + $0xb]]
      %v212 = vstv %s211
      %v213 = vmul.f32 %v161, %v212
      %v214 = vadd.f32 %v210, %v213
      %s215 = sld [smem:[#allocation3 + $0x22]]
      %v216 = vstv %s215
      %v217 = vadd.f32 %v214, %v216
      %v218 = vmax.f32 %v217, 0.0
      %s219 = sld [smem:[#allocation3 + $0xc]]
      %v220 = vstv %s219
      %v221 = vmul.f32 %v155, %v220
      %s222 = sld [smem:[#allocation3 + $0xd]]
      %v223 = vstv %s222
      %v224 = vmul.f32 %v157, %v223
      %v225 = vadd.f32 %v221, %v224
      %s226 = sld [smem:[#allocation3 + $0xe]]
      %v227 = vstv %s226
      %v228 = vmul.f32 %v159, %v227
      %v229 = vadd.f32 %v225, %v228
      %s230 = sld [smem:[#allocation3 + $0xf]]
      %v231 = vstv %s230
      %v232 = vmul.f32 %v161, %v231
      %v233 = vadd.f32 %v229, %v232
      %s234 = sld [smem:[#allocation3 + $0x23]]
      %v235 = vstv %s234
      %v236 = vadd.f32 %v233, %v235
      %v237 = vmax.f32 %v236, 0.0
      %s238 = sld [smem:[#allocation3 + $0x10]]
      %v239 = vstv %s238
      %v240 = vmul.f32 %v155, %v239
      %s241 = sld [smem:[#allocation3 + $0x11]]
      %v242 = vstv %s241
      %v243 = vmul.f32 %v157, %v242
      %v244 = vadd.f32 %v240, %v243
      %s245 = sld [smem:[#allocation3 + $0x12]]
      %v246 = vstv %s245
      %v247 = vmul.f32 %v159, %v246
      %v248 = vadd.f32 %v244, %v247
      %s249 = sld [smem:[#allocation3 + $0x13]]
      %v250 = vstv %s249
      %v251 = vmul.f32 %v161, %v250
      %v252 = vadd.f32 %v248, %v251
      %s253 = sld [smem:[#allocation3 + $0x24]]
      %v254 = vstv %s253
      %v255 = vadd.f32 %v252, %v254
      %v256 = vmax.f32 %v255, 0.0
      %s257 = sld [smem:[#allocation3 + $0x14]]
      %v258 = vstv %s257
      %v259 = vmul.f32 %v155, %v258
      %s260 = sld [smem:[#allocation3 + $0x15]]
      %v261 = vstv %s260
      %v262 = vmul.f32 %v157, %v261
      %v263 = vadd.f32 %v259, %v262
      %s264 = sld [smem:[#allocation3 + $0x16]]
      %v265 = vstv %s264
      %v266 = vmul.f32 %v159, %v265
      %v267 = vadd.f32 %v263, %v266
      %s268 = sld [smem:[#allocation3 + $0x17]]
      %v269 = vstv %s268
      %v270 = vmul.f32 %v161, %v269
      %v271 = vadd.f32 %v267, %v270
      %s272 = sld [smem:[#allocation3 + $0x25]]
      %v273 = vstv %s272
      %v274 = vadd.f32 %v271, %v273
      %v275 = vmax.f32 %v274, 0.0
      %s276 = sld [smem:[#allocation3 + $0x18]]
      %v277 = vstv %s276
      %v278 = vmul.f32 %v155, %v277
      %s279 = sld [smem:[#allocation3 + $0x19]]
      %v280 = vstv %s279
      %v281 = vmul.f32 %v157, %v280
      %v282 = vadd.f32 %v278, %v281
      %s283 = sld [smem:[#allocation3 + $0x1a]]
      %v284 = vstv %s283
      %v285 = vmul.f32 %v159, %v284
      %v286 = vadd.f32 %v282, %v285
      %s287 = sld [smem:[#allocation3 + $0x1b]]
      %v288 = vstv %s287
      %v289 = vmul.f32 %v161, %v288
      %v290 = vadd.f32 %v286, %v289
      %s291 = sld [smem:[#allocation3 + $0x26]]
      %v292 = vstv %s291
      %v293 = vadd.f32 %v290, %v292
      %v294 = vmax.f32 %v293, 0.0
      %s295 = sld [smem:[#allocation3 + $0x1c]]
      %v296 = vstv %s295
      %v297 = vmul.f32 %v155, %v296
      %s298 = sld [smem:[#allocation3 + $0x1d]]
      %v299 = vstv %s298
      %v300 = vmul.f32 %v157, %v299
      %v301 = vadd.f32 %v297, %v300
      %s302 = sld [smem:[#allocation3 + $0x1e]]
      %v303 = vstv %s302
      %v304 = vmul.f32 %v159, %v303
      %v305 = vadd.f32 %v301, %v304
      %s306 = sld [smem:[#allocation3 + $0x1f]]
      %v307 = vstv %s306
      %v308 = vmul.f32 %v161, %v307
      %v309 = vadd.f32 %v305, %v308
      %s310 = sld [smem:[#allocation3 + $0x27]]
      %v311 = vstv %s310
      %v312 = vadd.f32 %v309, %v311
      %v313 = vmax.f32 %v312, 0.0
      %s314 = sld [smem:[#allocation3 + $0x28]]
      %v315 = vstv %s314
      %v316 = vmul.f32 %v180, %v315
      %s317 = sld [smem:[#allocation3 + $0x29]]
      %v318 = vstv %s317
      %v319 = vmul.f32 %v199, %v318
      %v320 = vadd.f32 %v316, %v319
      %s321 = sld [smem:[#allocation3 + $0x2a]]
      %v322 = vstv %s321
      %v323 = vmul.f32 %v218, %v322
      %v324 = vadd.f32 %v320, %v323
      %s325 = sld [smem:[#allocation3 + $0x2b]]
      %v326 = vstv %s325
      %v327 = vmul.f32 %v237, %v326
      %v328 = vadd.f32 %v324, %v327
      %s329 = sld [smem:[#allocation3 + $0x2c]]
      %v330 = vstv %s329
      %v331 = vmul.f32 %v256, %v330
      %v332 = vadd.f32 %v328, %v331
      %s333 = sld [smem:[#allocation3 + $0x2d]]
      %v334 = vstv %s333
      %v335 = vmul.f32 %v275, %v334
      %v336 = vadd.f32 %v332, %v335
      %s337 = sld [smem:[#allocation3 + $0x2e]]
      %v338 = vstv %s337
      %v339 = vmul.f32 %v294, %v338
      %v340 = vadd.f32 %v336, %v339
      %s341 = sld [smem:[#allocation3 + $0x2f]]
      %v342 = vstv %s341
      %v343 = vmul.f32 %v313, %v342
      %v344 = vadd.f32 %v340, %v343
      %s345 = sld [smem:[#allocation3 + $0x48]]
      %v346 = vstv %s345
      %v347 = vadd.f32 %v344, %v346
      %v348 = vmul.f32 %v347, 0.5
      %v349 = vtanh.pop %v348
      %v350 = vadd.f32 %v349, 1.0
      %v351 = vmul.f32 %v350, 0.5
      %352 = vst [vmem:[%s154] sm:$0xff] %v351
      %s353 = sld [smem:[#allocation3 + $0x30]]
      %v354 = vstv %s353
      %v355 = vmul.f32 %v180, %v354
      %s356 = sld [smem:[#allocation3 + $0x31]]
      %v357 = vstv %s356
      %v358 = vmul.f32 %v199, %v357
      %v359 = vadd.f32 %v355, %v358
      %s360 = sld [smem:[#allocation3 + $0x32]]
      %v361 = vstv %s360
      %v362 = vmul.f32 %v218, %v361
      %v363 = vadd.f32 %v359, %v362
      %s364 = sld [smem:[#allocation3 + $0x33]]
      %v365 = vstv %s364
      %v366 = vmul.f32 %v237, %v365
      %v367 = vadd.f32 %v363, %v366
      %s368 = sld [smem:[#allocation3 + $0x34]]
      %v369 = vstv %s368
      %v370 = vmul.f32 %v256, %v369
      %v371 = vadd.f32 %v367, %v370
      %s372 = sld [smem:[#allocation3 + $0x35]]
      %v373 = vstv %s372
      %v374 = vmul.f32 %v275, %v373
      %v375 = vadd.f32 %v371, %v374
      %s376 = sld [smem:[#allocation3 + $0x36]]
      %v377 = vstv %s376
      %v378 = vmul.f32 %v294, %v377
      %v379 = vadd.f32 %v375, %v378
      %s380 = sld [smem:[#allocation3 + $0x37]]
      %v381 = vstv %s380
      %v382 = vmul.f32 %v313, %v381
      %v383 = vadd.f32 %v379, %v382
      %s384 = sld [smem:[#allocation3 + $0x49]]
      %v385 = vstv %s384
      %v386 = vadd.f32 %v383, %v385
      %v387 = vmul.f32 %v386, 0.5
      %v388 = vtanh.pop %v387
      %v389 = vadd.f32 %v388, 1.0
      %v390 = vmul.f32 %v389, 0.5
      %s391 = scalar_lea.vmem %s154, 8
      %392 = vst [vmem:[%s391] sm:$0xff] %v390
      %s393 = sld [smem:[#allocation3 + $0x38]]
      %v394 = vstv %s393
      %v395 = vmul.f32 %v180, %v394
      %s396 = sld [smem:[#allocation3 + $0x39]]
      %v397 = vstv %s396
      %v398 = vmul.f32 %v199, %v397
      %v399 = vadd.f32 %v395, %v398
      %s400 = sld [smem:[#allocation3 + $0x3a]]
      %v401 = vstv %s400
      %v402 = vmul.f32 %v218, %v401
      %v403 = vadd.f32 %v399, %v402
      %s404 = sld [smem:[#allocation3 + $0x3b]]
      %v405 = vstv %s404
      %v406 = vmul.f32 %v237, %v405
      %v407 = vadd.f32 %v403, %v406
      %s408 = sld [smem:[#allocation3 + $0x3c]]
      %v409 = vstv %s408
      %v410 = vmul.f32 %v256, %v409
      %v411 = vadd.f32 %v407, %v410
      %s412 = sld [smem:[#allocation3 + $0x3d]]
      %v413 = vstv %s412
      %v414 = vmul.f32 %v275, %v413
      %v415 = vadd.f32 %v411, %v414
      %s416 = sld [smem:[#allocation3 + $0x3e]]
      %v417 = vstv %s416
      %v418 = vmul.f32 %v294, %v417
      %v419 = vadd.f32 %v415, %v418
      %s420 = sld [smem:[#allocation3 + $0x3f]]
      %v421 = vstv %s420
      %v422 = vmul.f32 %v313, %v421
      %v423 = vadd.f32 %v419, %v422
      %s424 = sld [smem:[#allocation3 + $0x4a]]
      %v425 = vstv %s424
      %v426 = vadd.f32 %v423, %v425
      %v427 = vmul.f32 %v426, 0.5
      %v428 = vtanh.pop %v427
      %v429 = vadd.f32 %v428, 1.0
      %v430 = vmul.f32 %v429, 0.5
      %s431 = scalar_lea.vmem %s154, 16
      %432 = vst [vmem:[%s431] sm:$0xff] %v430
      %s433 = sld [smem:[#allocation3 + $0x40]]
      %v434 = vstv %s433
      %v435 = vmul.f32 %v180, %v434
      %s436 = sld [smem:[#allocation3 + $0x41]]
      %v437 = vstv %s436
      %v438 = vmul.f32 %v199, %v437
      %v439 = vadd.f32 %v435, %v438
      %s440 = sld [smem:[#allocation3 + $0x42]]
      %v441 = vstv %s440
      %v442 = vmul.f32 %v218, %v441
      %v443 = vadd.f32 %v439, %v442
      %s444 = sld [smem:[#allocation3 + $0x43]]
      %v445 = vstv %s444
      %v446 = vmul.f32 %v237, %v445
      %v447 = vadd.f32 %v443, %v446
      %s448 = sld [smem:[#allocation3 + $0x44]]
      %v449 = vstv %s448
      %v450 = vmul.f32 %v256, %v449
      %v451 = vadd.f32 %v447, %v450
      %s452 = sld [smem:[#allocation3 + $0x45]]
      %v453 = vstv %s452
      %v454 = vmul.f32 %v275, %v453
      %v455 = vadd.f32 %v451, %v454
      %s456 = sld [smem:[#allocation3 + $0x46]]
      %v457 = vstv %s456
      %v458 = vmul.f32 %v294, %v457
      %v459 = vadd.f32 %v455, %v458
      %s460 = sld [smem:[#allocation3 + $0x47]]
      %v461 = vstv %s460
      %v462 = vmul.f32 %v313, %v461
      %v463 = vadd.f32 %v459, %v462
      %s464 = sld [smem:[#allocation3 + $0x4b]]
      %v465 = vstv %s464
      %v466 = vadd.f32 %v463, %v465
      %v467 = vmul.f32 %v466, 0.5
      %v468 = vtanh.pop %v467
      %v469 = vadd.f32 %v468, 1.0
      %v470 = vmul.f32 %v469, 0.5
      %s471 = scalar_lea.vmem %s154, 24
      %472 = vst [vmem:[%s471] sm:$0xff] %v470
      %p473 = scmp.lt.s32.totalorder %s23, 1
      %s474 = scalar_select %p473, %s23, 1
      %p475 = scmp.lt.s32.totalorder %s24, 0
      %s476 = scalar_select %p475, %s24, 0
      %s477 = smul.addr %s474, 4
      %s478 = sadd.s32 %s476, %s477
      %s479 = smul.addr %s478, 8
      %s480 = scalar_lea.vmem %s2, %s479
      // Predicated region
      $region25: #{spatial_attention.1} parent=23 // pred_check
        %p481 = pneg %p79
      $region26: #{spatial_attention.1} parent=23 // pred_check_branch
        %483 = sbr.rel (%p481) target = $region28
      $region27: #{spatial_attention.1} parent=23 // pred_region
        _
      $region28: #{spatial_attention.1} parent=23 // pred_fallthru
        _
    $region24: #{spatial_attention.1} parent=5 // pred_fallthru
      _
    %p484 = scmp.le.s32.totalorder 2, %s14
    // Predicated region
    $region29: #{spatial_attention.1} parent=5 // pred_check
      %p485 = pneg %p484
    $region30: #{spatial_attention.1} parent=5 // pred_check_branch
      %487 = sbr.rel (%p485) target = $region32
    $region31: #{spatial_attention.1} parent=5 // pred_region
      %s488 = ssub.s32 %s14, 2
      // Predicated region
      $region33: #{spatial_attention.1} parent=31 // pred_check
        %p489 = pneg %p85
      $region34: #{spatial_attention.1} parent=31 // pred_check_branch
        %491 = sbr.rel (%p489) target = $region36
      $region35: #{spatial_attention.1} parent=31 // pred_region
        %p492 = scmp.lt.s32.totalorder %s25, 1
        %s493 = scalar_select %p492, %s25, 1
        %p494 = scmp.lt.s32.totalorder %s26, 0
        %s495 = scalar_select %p494, %s26, 0
        %s496 = smul.addr %s493, 4
        %s497 = sadd.s32 %s495, %s496
        %s498 = smul.addr %s497, 8
        %s499 = scalar_lea.vmem %s2, %s498
      $region36: #{spatial_attention.1} parent=31 // pred_fallthru
        _
    $region32: #{spatial_attention.1} parent=5 // pred_fallthru
      _
  $region6: #{spatial_attention.1} parent=0 // loop_footer
    %s18 = sadd.s32 1, %s14
  $region7: #{spatial_attention.1} parent=0 // loop_footer_branch
    %13 = sbr.rel target = $region3
  $region8: #{spatial_attention.1} parent=0 // loop_exit
    _

</llo_original>
